<compile_context>
chip_gen: v5e
topology: v5e:2x2
jax: 0.10.0
libtpu: 0.0.40
codegen_flags: <defaults>
</compile_context>

<pallas_src>
import jax
import jax.numpy as jnp
from jax.experimental import pallas as pl
from jax.experimental.pallas import tpu as pltpu


def _round_up(x: int, m: int) -> int:
    return ((x + m - 1) // m) * m


def _cdiv(a: int, b: int) -> int:
    return (a + b - 1) // b


def maf_forward_kernel(x_ref, w_ref, out_ref):
    """x_ref: (D, TB) feature-major [X^T ; c^T]; w_ref: (NWr, D); out_ref: (out+1, TB)."""
    out_dim = out_ref.shape[0] - 1
    xcat = x_ref[...]                                                    # (D, TB) f32

    # Single fused MXU contraction: rows of W are [A | B | colsum(A) | zero pad],
    # so one dot yields a, b and log_det simultaneously (batch on lanes).
    y = jnp.dot(w_ref[...], xcat, preferred_element_type=jnp.float32)   # (NWr, TB)

    a = y[:out_dim, :]                                                   # (out, TB)
    b = y[out_dim:2 * out_dim, :]                                        # (out, TB)
    z = xcat[:out_dim, :] * jnp.exp(a) + b                               # (out, TB)

    # Direct slice stores (lane-dense, no in-kernel concat / extra VMEM temp).
    out_ref[:out_dim, :] = z
    out_ref[out_dim:out_dim + 1, :] = y[2 * out_dim:2 * out_dim + 1, :]


def maf_layer_forward(X, c, pa_mat, pb_mat, input_dim, output_dim,
                      *, max_block_batch=8192):
    """X: (batch, output_dim) f32, c: (batch, input_dim) f32.

    pa_mat/pb_mat: dense (output_dim, D) parameter matrices; row i holds the
    PyTorch parameter vector pa[i]/pb[i] in its first (i + input_dim) entries
    (the tail is ignored via the autoregressive mask).
    Returns (z (batch, output_dim), log_det (batch,)), matching reverse_f=False.
    """
    batch = X.shape[0]
    D = input_dim + output_dim
    assert pa_mat.shape == (output_dim, D) and pb_mat.shape == (output_dim, D)

    # ---- glue (plain JAX): fused, masked weight slab (tiny; stays f32) ----
    col = jnp.arange(D)[None, :]
    row = jnp.arange(output_dim)[:, None]
    mask = col < (row + input_dim)                                # (out, D)
    A = jnp.where(mask, pa_mat, 0.0).astype(jnp.float32)          # NaN-safe masking
    Bm = jnp.where(mask, pb_mat, 0.0).astype(jnp.float32)
    ld_row = jnp.sum(A, axis=0, keepdims=True)                    # log_det = colsum(A) @ xcat^T
    W = jnp.concatenate([A, Bm, ld_row], axis=0)                  # (2*out+1, D), cols in [c | X] order
    # Kernel streams features in [X ; c] order (so z's multiplicand is rows 0..out-1,
    # a sublane-aligned slice); permute the weight columns to match.
    W = jnp.concatenate([W[:, input_dim:], W[:, :input_dim]], axis=1)
    NWr = _round_up(2 * output_dim + 1, 8)                        # sublane-pad the tiny M dim
    W = jnp.pad(W, ((0, NWr - W.shape[0]), (0, 0)))               # (NWr, D)

    # ---- feature-major, batch-on-lanes input: rows [X^T ; c^T] (layout plumbing) ----
    xcat_T = jnp.concatenate([X.T, c.T], axis=0).astype(jnp.float32)   # (D, batch)

    # ---- batch tiling on the lane axis: big tiles, minimal tail padding ----
    pb128 = _round_up(batch, 128)
    grid_n = max(1, _cdiv(pb128, max_block_batch))
    tb = _round_up(_cdiv(pb128, grid_n), 128)                     # even split, lane-aligned
    padded_batch = grid_n * tb
    xcat_T = jnp.pad(xcat_T, ((0, 0), (0, padded_batch - batch)))

    out = pl.pallas_call(
        maf_forward_kernel,
        out_shape=jax.ShapeDtypeStruct((output_dim + 1, padded_batch), jnp.float32),
        grid_spec=pltpu.PrefetchScalarGridSpec(
            num_scalar_prefetch=0,
            grid=(grid_n,),
            in_specs=[
                pl.BlockSpec((D, tb), lambda i: (0, i)),          # streamed xcat^T tile
                pl.BlockSpec((NWr, D), lambda i: (0, 0)),         # resident weight slab
            ],
            out_specs=pl.BlockSpec((output_dim + 1, tb), lambda i: (0, i)),
        ),
        compiler_params=pltpu.CompilerParams(
            dimension_semantics=("parallel",)),                   # shard batch tiles across TCs (v7x)
    )(xcat_T, W)

    z = out[:output_dim, :batch].T                                # (batch, out)
    log_det = out[output_dim, :batch]                             # (batch,)
    return z, log_det


def maf_layer_ref(X, c, pa_mat, pb_mat, input_dim, output_dim):
    """Pure-JAX reference mirroring the PyTorch loop exactly."""
    xcat = jnp.concatenate([c, X], axis=1)                        # (batch, D)
    log_det = jnp.zeros((X.shape[0],), jnp.float32)
    z_cols = []
    for i in range(output_dim):
        w_a = pa_mat[i, : i + input_dim]
        w_b = pb_mat[i, : i + input_dim]
        a = xcat[:, : i + input_dim] @ w_a
        b = xcat[:, : i + input_dim] @ w_b
        z_cols.append(xcat[:, i + input_dim] * jnp.exp(a) + b)
        log_det = log_det + a
    return jnp.stack(z_cols, axis=1), log_det


if __name__ == "__main__":
    input_dim = 4
    output_dim = 8
    batch = 8
    D = input_dim + output_dim

    key = jax.random.PRNGKey(0)
    kx, kc, ka, kb, kx2, kc2 = jax.random.split(key, 6)
    X = jax.random.normal(kx, (batch, output_dim), jnp.float32)
    c = jax.random.normal(kc, (batch, input_dim), jnp.float32)

    # The module inits parameters to zeros; small random values are used here so
    # the kernel exercises nontrivial compute.
    pa_mat = 0.1 * jax.random.normal(ka, (output_dim, D), jnp.float32)
    pb_mat = 0.1 * jax.random.normal(kb, (output_dim, D), jnp.float32)

    # Small-shape check (single grid step).
    z_ref, ld_ref = maf_layer_ref(X, c, pa_mat, pb_mat, input_dim, output_dim)
    z, ld = maf_layer_forward(X, c, pa_mat, pb_mat, input_dim, output_dim)
    jax.block_until_ready((z, ld))
    assert z.shape == (batch, output_dim) and ld.shape == (batch,)
    assert jnp.allclose(z, z_ref, atol=1e-5, rtol=1e-4)
    assert jnp.allclose(ld, ld_ref, atol=1e-5, rtol=1e-4)

    # Multi-tile grid path: forces grid_n > 1 and a padded tail tile.
    batch2 = 300
    X2 = jax.random.normal(kx2, (batch2, output_dim), jnp.float32)
    c2 = jax.random.normal(kc2, (batch2, input_dim), jnp.float32)
    z2_ref, ld2_ref = maf_layer_ref(X2, c2, pa_mat, pb_mat, input_dim, output_dim)
    z2, ld2 = maf_layer_forward(X2, c2, pa_mat, pb_mat, input_dim, output_dim,
                                max_block_batch=128)
    jax.block_until_ready((z2, ld2))
    assert jnp.allclose(z2, z2_ref, atol=1e-5, rtol=1e-4)
    assert jnp.allclose(ld2, ld2_ref, atol=1e-5, rtol=1e-4)

    print("KERNEL_OK")
</pallas_src>

<mosaic_0001>
module attributes {stable_mosaic.version = 11 : i64} {
  func.func @maf_forward_kernel(%arg0: i32, %arg1: memref<12x128xf32, #tpu.memory_space<vmem>>, %arg2: memref<24x12xf32, #tpu.memory_space<vmem>>, %arg3: memref<9x128xf32, #tpu.memory_space<vmem>>) attributes {dimension_semantics = [#tpu.dimension_semantics<parallel>], iteration_bounds = array<i64: 1>, scalar_prefetch = 0 : i64, scratch_operands = 0 : i64, tpu.core_type = #tpu.core_type<tc>, window_params = [{transform_indices = @transform_0, window_bounds = array<i64: 12, 128>}, {pipeline_mode = #tpu.pipeline_mode<synchronous>, transform_indices = @transform_1, window_bounds = array<i64: 24, 12>}, {transform_indices = @transform_2, window_bounds = array<i64: 9, 128>}]} {
    %c0 = arith.constant 0 : index
    %c0_0 = arith.constant 0 : index
    %0 = vector.load %arg1[%c0, %c0_0] : memref<12x128xf32, #tpu.memory_space<vmem>>, vector<12x128xf32>
    %c0_1 = arith.constant 0 : index
    %c0_2 = arith.constant 0 : index
    %1 = vector.load %arg2[%c0_1, %c0_2] : memref<24x12xf32, #tpu.memory_space<vmem>>, vector<24x12xf32>
    %cst = arith.constant dense<0.000000e+00> : vector<24x128xf32>
    %2 = tpu.matmul %1, %0, %cst {dimension_numbers = #tpu.dot_dimension_numbers<[1], [0], [0], [1], [0, 0, 1, 1], [], []>} : vector<24x12xf32>, vector<12x128xf32>, vector<24x128xf32> -> vector<24x128xf32>
    %3 = vector.extract_strided_slice %2 {offsets = [0, 0], sizes = [8, 128], strides = [1, 1]} : vector<24x128xf32> to vector<8x128xf32>
    %4 = vector.extract_strided_slice %2 {offsets = [8, 0], sizes = [8, 128], strides = [1, 1]} : vector<24x128xf32> to vector<8x128xf32>
    %5 = vector.extract_strided_slice %0 {offsets = [0, 0], sizes = [8, 128], strides = [1, 1]} : vector<12x128xf32> to vector<8x128xf32>
    %6 = math.exp %3 : vector<8x128xf32>
    %7 = arith.mulf %5, %6 : vector<8x128xf32>
    %8 = arith.addf %7, %4 : vector<8x128xf32>
    %c0_3 = arith.constant 0 : index
    %c0_4 = arith.constant 0 : index
    %9 = vector.load %arg3[%c0_3, %c0_4] : memref<9x128xf32, #tpu.memory_space<vmem>>, vector<8x128xf32>
    tpu.vector_store %arg3[%c0_3, %c0_4], %8 {strides = array<i32>} : memref<9x128xf32, #tpu.memory_space<vmem>>, vector<8x128xf32>,
    %10 = vector.extract_strided_slice %2 {offsets = [16, 0], sizes = [1, 128], strides = [1, 1]} : vector<24x128xf32> to vector<1x128xf32>
    %c8 = arith.constant 8 : index
    %c0_5 = arith.constant 0 : index
    %11 = vector.load %arg3[%c8, %c0_5] : memref<9x128xf32, #tpu.memory_space<vmem>>, vector<1x128xf32>
    tpu.vector_store %arg3[%c8, %c0_5], %10 {strides = array<i32>} : memref<9x128xf32, #tpu.memory_space<vmem>>, vector<1x128xf32>,
    return
  }
  func.func @transform_0(%arg0: i32) -> (i32, i32) {
    %c0_i32 = arith.constant 0 : i32
    %c0_i32_0 = arith.constant 0 : i32
    return %c0_i32, %arg0 : i32, i32
  }
  func.func @transform_1(%arg0: i32) -> (i32, i32) {
    %c0_i32 = arith.constant 0 : i32
    %c0_i32_0 = arith.constant 0 : i32
    %c0_i32_1 = arith.constant 0 : i32
    return %c0_i32, %c0_i32_0 : i32, i32
  }
  func.func @transform_2(%arg0: i32) -> (i32, i32) {
    %c0_i32 = arith.constant 0 : i32
    %c0_i32_0 = arith.constant 0 : i32
    return %c0_i32, %arg0 : i32, i32
  }
}

</mosaic_0001>

<llo_original>
// kernel: tpu_custom_call.1
$region0: #{tpu_custom_call.1}
  #allocation0 [shape = 'u32[]', space=smem, size = 0x4, offset = 0x4, fixed_abs, tag = 'smem constant byte address 0x4 - core index']
  #allocation1 [shape = 'u32[72,128]{1,0:T(1,128)}', space=vmem, size = 0x9000, scoped, tag = 'internal scratch']
  %s0 = inlined_call_operand.vmem [shape: f32[12,128], index: 0, kind: input, shape index: {}]
  %s1 = inlined_call_operand.vmem [shape: f32[24,12], index: 1, kind: input, shape index: {}]
  %s2 = inlined_call_operand.hbm [shape: f32[9,128], index: 2, kind: output, shape index: {}]
  %s3 = sld [smem:[#allocation0]]
  $region18: #{tpu_custom_call.1} parent=0
    _
  %s5 = ssub.s32 1, %s3
  %s6 = scalar_select 0, %s5, %s3
  $region1: #{tpu_custom_call.1} parent=0
    #allocation2 [shape = 'u8[8192]{0}', space=vmem, size = 0x2000, scoped, tag = 'output window, operand 0, single buffered']
    #allocation3 [shape = 's32[1]{0}', space=sflag, size = 0x4, scoped, tag = 'scoped memory for tpu_custom_call.1']
    %7 = vsyncpa [#allocation3], 0
    // Predicated region
    $region2: #{tpu_custom_call.1} parent=1 // pred_check
      _
    $region3: #{tpu_custom_call.1} parent=1 // pred_check_branch
      %9 = sbr.rel (0) target = $region5
    $region4: #{tpu_custom_call.1} parent=1 // pred_region
      _
    $region5: #{tpu_custom_call.1} parent=1 // pred_fallthru
      _
    // Predicated region
    $region6: #{tpu_custom_call.1} parent=1 // pred_check
      _
    $region7: #{tpu_custom_call.1} parent=1 // pred_check_branch
      %11 = sbr.rel (0) target = $region9
    $region8: #{tpu_custom_call.1} parent=1 // pred_region
      _
    $region9: #{tpu_custom_call.1} parent=1 // pred_fallthru
      _
    %v12 = vld [vmem:[%s0] sm:$0xff]
    %v13 = vld [vmem:[%s0 + $0x8] sm:$0xf]
    %v14 = vld [vmem:[%s1] sm:$0xff]
    %v15 = vld [vmem:[%s1 + $0x8] sm:$0xff]
    %v16 = vld [vmem:[%s1 + $0x10] sm:$0xff]
    %vm17 = vcmask 97280
    %v19 = vsel %vm17, %v14, 0
    %v22 = vsel %vm17, %v15, 0
    %v25 = vsel %vm17, %v16, 0
    %vm27 = vcmask 1043456
    %v29 = vsel %vm27, %v13, 0
    %31 = vmatpush.msra.mxu0 0.0
    %32 = vmatpush.msra.mxu0 0.0
    %33 = vmatpush.msra.mxu0 0.0
    %34 = vmatpush.msra.mxu0 0.0
    %35 = vmatpush.msra.mxu0 0.0
    %36 = vmatpush.msra.mxu0 0.0
    %37 = vmatpush.msra.mxu0 0.0
    %38 = vmatpush.msra.mxu0 0.0
    %39 = vmatpush.msra.mxu0 0.0
    %40 = vmatpush.msra.mxu0 0.0
    %41 = vmatpush.msra.mxu0 0.0
    %42 = vmatpush.msra.mxu0 0.0
    %43 = vmatpush.msra.mxu0 0.0
    %44 = vmatpush.msra.mxu0 0.0
    %45 = vmatpush.msra.mxu0 %v29
    %46 = vmatpush.msra.mxu0 %v12
    %47 = vmatmul.f32.gmra.mxu0 %v19
    %v48 = vpop.f32.mrf.mxu0
    %v49 = vadd.f32 0.0, %v48
    %50 = vmatmul.f32.gmra.mxu0 %v22
    %v51 = vpop.f32.mrf.mxu0
    %v52 = vadd.f32 0.0, %v51
    %53 = vmatmul.f32.gmra.mxu0 %v25
    %v54 = vpop.f32.mrf.mxu0
    %v55 = vadd.f32 0.0, %v54
    %56 = vdwg.mxu0
    %v57 = vmul.f32 %v49, 1.442695
    %v58 = vpow.pop %v57
    %v59 = vmul.f32 %v12, %v58
    %v60 = vadd.f32 %v59, %v52
    %61 = vst [vmem:[#allocation2] sm:$0xff] %v60
    %62 = vst [vmem:[#allocation2 + $0x8] sm:$0x1] %v55
    // Predicated region
    $region10: #{tpu_custom_call.1} parent=1 // pred_check
      _
    $region11: #{tpu_custom_call.1} parent=1 // pred_check_branch
      %64 = sbr.rel (0) target = $region13
    $region12: #{tpu_custom_call.1} parent=1 // pred_region
      %66 = vsyncadd [#allocation3], 0
      %s67 = sshll.u32 [#allocation2], 4
      %s68 = int_to_ptr.vmem [resolvable:$true] %s67
      %s69 = sshll.u32 %s2, 4
      %s70 = int_to_ptr.hbm [resolvable:$true] %s69
      %75 = dma.vmem_to_hbm [thread:$0]  %s68, 256, %s70, [#allocation3], 128, 128, 8
    $region13: #{tpu_custom_call.1} parent=1 // pred_fallthru
      _
    // Predicated region
    $region14: #{tpu_custom_call.1} parent=1 // pred_check
      _
    $region15: #{tpu_custom_call.1} parent=1 // pred_check_branch
      %77 = sbr.rel (0) target = $region17
    $region16: #{tpu_custom_call.1} parent=1 // pred_region
      %79 = dma.done [#allocation3], 256
    $region17: #{tpu_custom_call.1} parent=1 // pred_fallthru
      _
    %80 = vsyncpa [#allocation3], 1

</llo_original>
